<compile_context>
chip_gen: v6e
topology: v6e:2x2x1
jax: 0.10.0
libtpu: 0.0.40
codegen_flags: <defaults>
</compile_context>

<pallas_src>
import functools

import jax
import jax.numpy as jnp
from jax.experimental import pallas as pl
from jax.experimental.pallas import tpu as pltpu

EPS = 1e-6


def _sublayer_connection_kernel(x_ref, g_ref, b_ref, w_ref, wb_ref, *rest,
                                dropout_p, keep_threshold):
    if dropout_p > 0.0:
        bits_ref, o_ref = rest
    else:
        (o_ref,) = rest

    x = x_ref[...].astype(jnp.float32)                       # (TM, D)
    d = x.shape[-1]

    # --- LayerNorm (annotated-transformer style: unbiased std, eps on std) ---
    # single pass: sum and sum-of-squares feed both moments (one XLU reduction pair)
    s1 = jnp.sum(x, axis=-1, keepdims=True)
    s2 = jnp.sum(x * x, axis=-1, keepdims=True)
    mean = s1 * (1.0 / d)
    var_unbiased = (s2 - mean * s1) * (1.0 / (d - 1))
    std = jnp.sqrt(jnp.maximum(var_unbiased, 0.0))
    inv = 1.0 / (std + EPS)                                   # (TM, 1) only
    normed = (x - mean) * inv * g_ref[...] + b_ref[...]       # (TM, D)

    # --- sublayer: Linear(D, D) on the MXU, bf16 operands / f32 accumulation ---
    s = jnp.dot(normed.astype(jnp.bfloat16), w_ref[...],
                preferred_element_type=jnp.float32)
    s = s + wb_ref[...]

    # --- inverted dropout (training semantics), integer threshold keep-test ---
    if dropout_p > 0.0:
        keep = bits_ref[...] >= jnp.uint32(keep_threshold)
        s = jnp.where(keep, s * (1.0 / (1.0 - dropout_p)), 0.0)

    # --- residual connection ---
    o_ref[...] = (x + s).astype(o_ref.dtype)


def sublayer_connection(x, gamma, beta, w, wb, *, dropout_p=0.0, seed=0, tm=512):
    """x: (B, S, D) float32. Returns x + dropout(LN(x) @ w + wb)."""
    B, S, D = x.shape
    # TODO(synk): D not a multiple of 128 would need lane padding + a masked LayerNorm.
    assert D % 128 == 0, "hidden dim must be lane-aligned (multiple of 128)"
    rows = B * S

    # Clamp / align the row tile: large tiles amortize per-step overhead and fill the MXU.
    tm = max(8, min(int(tm), rows))
    tm -= tm % 8
    padded_rows = -(-rows // tm) * tm

    x2 = x.reshape(rows, D)
    if padded_rows != rows:
        x2 = jnp.pad(x2, ((0, padded_rows - rows), (0, 0)))

    g2 = gamma.reshape(1, D).astype(jnp.float32)
    b2 = beta.reshape(1, D).astype(jnp.float32)
    wb2 = wb.reshape(1, D).astype(jnp.float32)
    w_bf16 = w.astype(jnp.bfloat16)       # half the resident weight VMEM (v7x budget)

    dropout_p = float(dropout_p)
    assert 0.0 <= dropout_p < 1.0, "dropout_p must be in [0, 1)"
    keep_threshold = min(int(round(dropout_p * 2.0 ** 32)), 2 ** 32 - 1)

    inputs = [x2, g2, b2, w_bf16, wb2]
    in_specs = [
        pl.BlockSpec((tm, D), lambda i: (i, 0)),    # x rows
        pl.BlockSpec((1, D), lambda i: (0, 0)),     # gamma
        pl.BlockSpec((1, D), lambda i: (0, 0)),     # beta
        pl.BlockSpec((D, D), lambda i: (0, 0)),     # sublayer weight (bf16)
        pl.BlockSpec((1, D), lambda i: (0, 0)),     # sublayer bias
    ]
    if dropout_p > 0.0:
        # TODO(synk): RNG stream is jax.random, not torch's nn.Dropout stream.
        bits = jax.random.bits(jax.random.PRNGKey(seed), (padded_rows, D),
                               dtype=jnp.uint32)
        inputs.append(bits)
        in_specs.append(pl.BlockSpec((tm, D), lambda i: (i, 0)))

    kernel = functools.partial(_sublayer_connection_kernel,
                               dropout_p=dropout_p,
                               keep_threshold=keep_threshold)

    # Advisory cost estimate so XLA schedules around the custom call sensibly.
    cost = pl.CostEstimate(
        flops=2 * padded_rows * D * D,
        transcendentals=padded_rows,                       # sqrt / reciprocal per row
        bytes_accessed=(2 * padded_rows * D * 4            # x in + out
                        + D * D * 2                        # bf16 weight
                        + (padded_rows * D * 4 if dropout_p > 0.0 else 0)))

    # VMEM budget: double-buffered x/out(/bits) tiles + double-buffered bf16 weight.
    tile_bytes = tm * D * 4
    vmem_need = (2 * tile_bytes * (3 if dropout_p > 0.0 else 2)
                 + 2 * D * D * 2 + 8 * D * 4)
    vmem_limit = min(max(2 * vmem_need, 32 << 20), 100 << 20)

    out = pl.pallas_call(
        kernel,
        out_shape=jax.ShapeDtypeStruct((padded_rows, D), x.dtype),
        grid_spec=pltpu.PrefetchScalarGridSpec(
            num_scalar_prefetch=0,
            grid=(padded_rows // tm,),
            in_specs=in_specs,
            out_specs=pl.BlockSpec((tm, D), lambda i: (i, 0)),
        ),
        compiler_params=pltpu.CompilerParams(
            dimension_semantics=("parallel",),
            vmem_limit_bytes=vmem_limit),
        cost_estimate=cost,
    )(*inputs)

    if padded_rows != rows:
        out = out[:rows]
    return out.reshape(B, S, D)


def _reference(x, gamma, beta, w, wb):
    # pure-JAX f32 reference (dropout disabled) matching the module's forward
    mean = jnp.mean(x, axis=-1, keepdims=True)
    diff = x - mean
    var = jnp.sum(diff * diff, axis=-1, keepdims=True) / (x.shape[-1] - 1)
    std = jnp.sqrt(var)
    normed = gamma * diff / (std + EPS) + beta
    s = normed @ w + wb
    return x + s


if __name__ == "__main__":
    B, S, D = 2, 8, 128
    key = jax.random.PRNGKey(0)
    kx, kw, kb = jax.random.split(key, 3)

    x = jax.random.normal(kx, (B, S, D), dtype=jnp.float32)

    # LayerNorm(size) parameters per the module's __init__: ones / zeros
    gamma = jnp.ones((D,), dtype=jnp.float32)
    beta = jnp.zeros((D,), dtype=jnp.float32)

    # Deterministic sublayer (Linear D->D) standing in for the `sublayer` lambda
    w = jax.random.normal(kw, (D, D), dtype=jnp.float32) * (1.0 / jnp.sqrt(D))
    wb = jax.random.normal(kb, (D,), dtype=jnp.float32) * 0.01

    # 1) dropout disabled -> check against pure-JAX f32 reference
    #    (tolerance accounts for the bf16 matmul operands inside the kernel)
    out_eval = sublayer_connection(x, gamma, beta, w, wb, dropout_p=0.0)
    jax.block_until_ready(out_eval)
    ref = _reference(x, gamma, beta, w, wb)
    assert jnp.allclose(out_eval, ref, atol=3e-2, rtol=3e-2), "mismatch vs reference"

    # 2) dropout enabled (training semantics): every element of (out - x) must be
    #    either exactly 0 (dropped) or (out_eval - x)/(1-p) (kept, inverted scaling).
    p = 0.1
    out_train = sublayer_connection(x, gamma, beta, w, wb, dropout_p=p, seed=1234)
    jax.block_until_ready(out_train)
    delta_t = (out_train - x).reshape(-1)
    delta_e = ((out_eval - x) / (1.0 - p)).reshape(-1)
    ok = jnp.isclose(delta_t, 0.0, atol=1e-6) | jnp.isclose(
        delta_t, delta_e, atol=1e-3, rtol=1e-3)
    assert bool(jnp.all(ok)), "dropout semantics mismatch"

    print("KERNEL_OK")
</pallas_src>

<mosaic_0001>
module attributes {stable_mosaic.version = 11 : i64} {
  func.func @_sublayer_connection_kernel(%arg0: i32, %arg1: memref<16x128xf32, #tpu.memory_space<vmem>>, %arg2: memref<1x128xf32, #tpu.memory_space<vmem>>, %arg3: memref<1x128xf32, #tpu.memory_space<vmem>>, %arg4: memref<128x128xbf16, #tpu.memory_space<vmem>>, %arg5: memref<1x128xf32, #tpu.memory_space<vmem>>, %arg6: memref<16x128xf32, #tpu.memory_space<vmem>>) attributes {dimension_semantics = [#tpu.dimension_semantics<parallel>], iteration_bounds = array<i64: 1>, scalar_prefetch = 0 : i64, scratch_operands = 0 : i64, tpu.core_type = #tpu.core_type<tc>, window_params = [{transform_indices = @transform_0, window_bounds = array<i64: 16, 128>}, {pipeline_mode = #tpu.pipeline_mode<synchronous>, transform_indices = @transform_1, window_bounds = array<i64: 1, 128>}, {pipeline_mode = #tpu.pipeline_mode<synchronous>, transform_indices = @transform_2, window_bounds = array<i64: 1, 128>}, {pipeline_mode = #tpu.pipeline_mode<synchronous>, transform_indices = @transform_3, window_bounds = array<i64: 128, 128>}, {pipeline_mode = #tpu.pipeline_mode<synchronous>, transform_indices = @transform_4, window_bounds = array<i64: 1, 128>}, {transform_indices = @transform_5, window_bounds = array<i64: 16, 128>}]} {
    %c0 = arith.constant 0 : index
    %c0_0 = arith.constant 0 : index
    %0 = vector.load %arg1[%c0, %c0_0] : memref<16x128xf32, #tpu.memory_space<vmem>>, vector<16x128xf32>
    %cst = arith.constant dense<0.000000e+00> : vector<16xf32>
    %1 = vector.multi_reduction <add>, %0, %cst [1] : vector<16x128xf32> to vector<16xf32>
    %2 = vector.shape_cast %1 : vector<16xf32> to vector<16x1xf32>
    %3 = arith.mulf %0, %0 : vector<16x128xf32>
    %cst_1 = arith.constant dense<0.000000e+00> : vector<16xf32>
    %4 = vector.multi_reduction <add>, %3, %cst_1 [1] : vector<16x128xf32> to vector<16xf32>
    %5 = vector.shape_cast %4 : vector<16xf32> to vector<16x1xf32>
    %cst_2 = arith.constant 7.812500e-03 : f32
    %6 = vector.broadcast %cst_2 : f32 to vector<16x1xf32>
    %7 = arith.mulf %2, %6 : vector<16x1xf32>
    %8 = arith.mulf %7, %2 : vector<16x1xf32>
    %9 = arith.subf %5, %8 : vector<16x1xf32>
    %cst_3 = arith.constant 0.00787401571 : f32
    %10 = vector.broadcast %cst_3 : f32 to vector<16x1xf32>
    %11 = arith.mulf %9, %10 : vector<16x1xf32>
    %cst_4 = arith.constant 0.000000e+00 : f32
    %12 = vector.broadcast %cst_4 : f32 to vector<16x1xf32>
    %13 = arith.maximumf %11, %12 : vector<16x1xf32>
    %14 = math.sqrt %13 : vector<16x1xf32>
    %cst_5 = arith.constant 9.99999997E-7 : f32
    %15 = vector.broadcast %cst_5 : f32 to vector<16x1xf32>
    %16 = arith.addf %14, %15 : vector<16x1xf32>
    %cst_6 = arith.constant 1.000000e+00 : f32
    %17 = vector.broadcast %cst_6 : f32 to vector<16x1xf32>
    %18 = arith.divf %17, %16 : vector<16x1xf32>
    %19 = vector.broadcast %7 : vector<16x1xf32> to vector<16x128xf32>
    %20 = arith.subf %0, %19 : vector<16x128xf32>
    %21 = vector.broadcast %18 : vector<16x1xf32> to vector<16x128xf32>
    %22 = arith.mulf %20, %21 : vector<16x128xf32>
    %c0_7 = arith.constant 0 : index
    %c0_8 = arith.constant 0 : index
    %23 = vector.load %arg2[%c0_7, %c0_8] : memref<1x128xf32, #tpu.memory_space<vmem>>, vector<1x128xf32>
    %24 = vector.broadcast %23 : vector<1x128xf32> to vector<16x128xf32>
    %25 = arith.mulf %22, %24 : vector<16x128xf32>
    %c0_9 = arith.constant 0 : index
    %c0_10 = arith.constant 0 : index
    %26 = vector.load %arg3[%c0_9, %c0_10] : memref<1x128xf32, #tpu.memory_space<vmem>>, vector<1x128xf32>
    %27 = vector.broadcast %26 : vector<1x128xf32> to vector<16x128xf32>
    %28 = arith.addf %25, %27 : vector<16x128xf32>
    %29 = arith.truncf %28 : vector<16x128xf32> to vector<16x128xbf16>
    %c0_11 = arith.constant 0 : index
    %c0_12 = arith.constant 0 : index
    %30 = vector.load %arg4[%c0_11, %c0_12] : memref<128x128xbf16, #tpu.memory_space<vmem>>, vector<128x128xbf16>
    %cst_13 = arith.constant dense<0.000000e+00> : vector<16x128xf32>
    %31 = tpu.matmul %29, %30, %cst_13 {dimension_numbers = #tpu.dot_dimension_numbers<[1], [0], [0], [1], [0, 0, 1, 1], [], []>} : vector<16x128xbf16>, vector<128x128xbf16>, vector<16x128xf32> -> vector<16x128xf32>
    %c0_14 = arith.constant 0 : index
    %c0_15 = arith.constant 0 : index
    %32 = vector.load %arg5[%c0_14, %c0_15] : memref<1x128xf32, #tpu.memory_space<vmem>>, vector<1x128xf32>
    %33 = vector.broadcast %32 : vector<1x128xf32> to vector<16x128xf32>
    %34 = arith.addf %31, %33 : vector<16x128xf32>
    %35 = arith.addf %0, %34 : vector<16x128xf32>
    %c0_16 = arith.constant 0 : index
    %c0_17 = arith.constant 0 : index
    %36 = vector.load %arg6[%c0_16, %c0_17] : memref<16x128xf32, #tpu.memory_space<vmem>>, vector<16x128xf32>
    tpu.vector_store %arg6[%c0_16, %c0_17], %35 {strides = array<i32>} : memref<16x128xf32, #tpu.memory_space<vmem>>, vector<16x128xf32>,
    return
  }
  func.func @transform_0(%arg0: i32) -> (i32, i32) {
    %c0_i32 = arith.constant 0 : i32
    %c0_i32_0 = arith.constant 0 : i32
    return %arg0, %c0_i32 : i32, i32
  }
  func.func @transform_1(%arg0: i32) -> (i32, i32) {
    %c0_i32 = arith.constant 0 : i32
    %c0_i32_0 = arith.constant 0 : i32
    %c0_i32_1 = arith.constant 0 : i32
    return %c0_i32, %c0_i32_0 : i32, i32
  }
  func.func @transform_2(%arg0: i32) -> (i32, i32) {
    %c0_i32 = arith.constant 0 : i32
    %c0_i32_0 = arith.constant 0 : i32
    %c0_i32_1 = arith.constant 0 : i32
    return %c0_i32, %c0_i32_0 : i32, i32
  }
  func.func @transform_3(%arg0: i32) -> (i32, i32) {
    %c0_i32 = arith.constant 0 : i32
    %c0_i32_0 = arith.constant 0 : i32
    %c0_i32_1 = arith.constant 0 : i32
    return %c0_i32, %c0_i32_0 : i32, i32
  }
  func.func @transform_4(%arg0: i32) -> (i32, i32) {
    %c0_i32 = arith.constant 0 : i32
    %c0_i32_0 = arith.constant 0 : i32
    %c0_i32_1 = arith.constant 0 : i32
    return %c0_i32, %c0_i32_0 : i32, i32
  }
  func.func @transform_5(%arg0: i32) -> (i32, i32) {
    %c0_i32 = arith.constant 0 : i32
    %c0_i32_0 = arith.constant 0 : i32
    return %arg0, %c0_i32 : i32, i32
  }
}

</mosaic_0001>

<llo_original>
// kernel: tpu_custom_call.1
$region0: #{tpu_custom_call.1}
  #allocation0 [shape = 'u32[]', space=smem, size = 0x4, offset = 0x4, fixed_abs, tag = 'smem constant byte address 0x4 - core index']
  #allocation1 [shape = 'u32[144,128]{1,0:T(1,128)}', space=vmem, size = 0x12000, scoped, tag = 'internal scratch']
  %s0 = inlined_call_operand.hbm [shape: f32[16,128], index: 0, kind: input, shape index: {}]
  %s1 = inlined_call_operand.vmem [shape: f32[1,128], index: 1, kind: input, shape index: {}]
  %s2 = inlined_call_operand.vmem [shape: f32[1,128], index: 2, kind: input, shape index: {}]
  %s3 = inlined_call_operand.hbm [shape: bf16[128,128], index: 3, kind: input, shape index: {}]
  %s4 = inlined_call_operand.vmem [shape: f32[1,128], index: 4, kind: input, shape index: {}]
  %s5 = inlined_call_operand.hbm [shape: f32[16,128], index: 5, kind: output, shape index: {}]
  %s6 = sld [smem:[#allocation0]]
  $region38: #{tpu_custom_call.1} parent=0
    _
  %s8 = ssub.s32 1, %s6
  %s9 = scalar_select 0, %s8, %s6
  $region1: #{tpu_custom_call.1} parent=0
    #allocation2 [shape = 'u8[8192]{0}', space=vmem, size = 0x2000, scoped, tag = 'input window, operand 0, single buffered']
    #allocation3 [shape = 's32[1]{0}', space=sflag, size = 0x4, scoped, tag = 'scoped memory for tpu_custom_call.1']
    #allocation4 [shape = 's32[1]{0}', space=sflag, size = 0x4, scoped, tag = 'scoped memory for tpu_custom_call.1']
    #allocation5 [shape = 'u8[32768]{0}', space=vmem, size = 0x8000, scoped, tag = 'input window, operand 3, single buffered']
    #allocation6 [shape = 's32[1]{0}', space=sflag, size = 0x4, scoped, tag = 'scoped memory for tpu_custom_call.1']
    #allocation7 [shape = 'u8[8192]{0}', space=vmem, size = 0x2000, scoped, tag = 'output window, operand 0, single buffered']
    %10 = vsyncpa [#allocation3], 0
    %11 = vsyncpa [#allocation6], 0
    %12 = vsyncpa [#allocation4], 0
    // Predicated region
    $region2: #{tpu_custom_call.1} parent=1 // pred_check
      _
    $region3: #{tpu_custom_call.1} parent=1 // pred_check_branch
      %14 = sbr.rel (0) target = $region5
    $region4: #{tpu_custom_call.1} parent=1 // pred_region
      %s16 = ssub.s32 256, 256
      %17 = vsyncadd [#allocation3], %s16
      %s18 = sshll.u32 [#allocation2], 4
      %s19 = int_to_ptr.vmem [resolvable:$true] %s18
      %24 = dma.hbm_to_vmem [thread:$0]  %s0, 256, %s19, [#allocation3], 128, 128, 8
    $region5: #{tpu_custom_call.1} parent=1 // pred_fallthru
      _
    // Predicated region
    $region6: #{tpu_custom_call.1} parent=1 // pred_check
      _
    $region7: #{tpu_custom_call.1} parent=1 // pred_check_branch
      %26 = sbr.rel (0) target = $region9
    $region8: #{tpu_custom_call.1} parent=1 // pred_region
      _
    $region9: #{tpu_custom_call.1} parent=1 // pred_fallthru
      _
    // Predicated region
    $region10: #{tpu_custom_call.1} parent=1 // pred_check
      _
    $region11: #{tpu_custom_call.1} parent=1 // pred_check_branch
      %28 = sbr.rel (0) target = $region13
    $region12: #{tpu_custom_call.1} parent=1 // pred_region
      _
    $region13: #{tpu_custom_call.1} parent=1 // pred_fallthru
      _
    // Predicated region
    $region14: #{tpu_custom_call.1} parent=1 // pred_check
      _
    $region15: #{tpu_custom_call.1} parent=1 // pred_check_branch
      %30 = sbr.rel (0) target = $region17
    $region16: #{tpu_custom_call.1} parent=1 // pred_region
      %s32 = ssub.s32 1024, 1024
      %33 = vsyncadd [#allocation6], %s32
      %s34 = sshll.u32 [#allocation5], 4
      %s35 = int_to_ptr.vmem [resolvable:$true] %s34
      %40 = dma.hbm_to_vmem [thread:$0]  %s3, 1024, %s35, [#allocation6], 64, 64, 4
    $region17: #{tpu_custom_call.1} parent=1 // pred_fallthru
      _
    // Predicated region
    $region18: #{tpu_custom_call.1} parent=1 // pred_check
      _
    $region19: #{tpu_custom_call.1} parent=1 // pred_check_branch
      %42 = sbr.rel (0) target = $region21
    $region20: #{tpu_custom_call.1} parent=1 // pred_region
      _
    $region21: #{tpu_custom_call.1} parent=1 // pred_fallthru
      _
    // Predicated region
    $region22: #{tpu_custom_call.1} parent=1 // pred_check
      _
    $region23: #{tpu_custom_call.1} parent=1 // pred_check_branch
      %44 = sbr.rel (0) target = $region25
    $region24: #{tpu_custom_call.1} parent=1 // pred_region
      %45 = dma.done [#allocation3], 256
    $region25: #{tpu_custom_call.1} parent=1 // pred_fallthru
      _
    // Predicated region
    $region26: #{tpu_custom_call.1} parent=1 // pred_check
      _
    $region27: #{tpu_custom_call.1} parent=1 // pred_check_branch
      %47 = sbr.rel (0) target = $region29
    $region28: #{tpu_custom_call.1} parent=1 // pred_region
      %48 = dma.done [#allocation6], 1024
    $region29: #{tpu_custom_call.1} parent=1 // pred_fallthru
      _
    %v50 = vld [vmem:[#allocation2] sm:$0xff]
    %v51 = vld [vmem:[#allocation2 + $0x8] sm:$0xff]
    %52 = vadd.xlane.f32.xlu0 %v50
    %v53 = vpop.xlane.xlu0 %52
    %54 = vadd.xlane.f32.xlu0 %v51
    %v55 = vpop.xlane.xlu0 %54
    %v56 = vmul.f32 %v50, %v50
    %v57 = vmul.f32 %v51, %v51
    %58 = vadd.xlane.f32.xlu0 %v56
    %v59 = vpop.xlane.xlu0 %58
    %60 = vadd.xlane.f32.xlu0 %v57
    %v61 = vpop.xlane.xlu0 %60
    %v62 = vmul.f32 %v53, 0.0078125
    %v63 = vmul.f32 %v55, 0.0078125
    %v64 = vmul.f32 %v62, %v53
    %v65 = vmul.f32 %v63, %v55
    %v66 = vsub.f32 %v59, %v64
    %v67 = vsub.f32 %v61, %v65
    %v68 = vmul.f32 %v66, 0.007874016
    %v69 = vmul.f32 %v67, 0.007874016
    %v70 = vmax.f32 %v68, 0.0
    %v71 = vmax.f32 %v69, 0.0
    %v72 = vrsqrt.pop %v70
    %v73 = vmul.f32 %v70, %v72
    %vm74 = vcmp.eq.f32.partialorder %v70, inf
    %v75 = vsel %vm74, %v70, %v73
    %vm76 = vcmp.eq.f32.partialorder %v70, 0.0
    %v77 = vand.u32 %v70, 2147483648
    %v78 = vsel %vm76, %v77, %v75
    %v79 = vrsqrt.pop %v71
    %v80 = vmul.f32 %v71, %v79
    %vm81 = vcmp.eq.f32.partialorder %v71, inf
    %v82 = vsel %vm81, %v71, %v80
    %vm83 = vcmp.eq.f32.partialorder %v71, 0.0
    %v84 = vand.u32 %v71, 2147483648
    %v85 = vsel %vm83, %v84, %v82
    %v86 = vadd.f32 %v78, 1e-06
    %v87 = vadd.f32 %v85, 1e-06
    %v88 = vrcp.pop %v86
    %v89 = vmul.f32 1.0, %v88
    %v90 = vrcp.pop %v87
    %v91 = vmul.f32 1.0, %v90
    %v92 = vsub.f32 %v50, %v62
    %v93 = vsub.f32 %v51, %v63
    %v94 = vmul.f32 %v92, %v89
    %v95 = vmul.f32 %v93, %v91
    %v96 = vld [vmem:[%s1] sm:$0x1]
    %v98 = vlaneseq
    %v99 = vshrl.u32 %v98, 7
    %v100 = vsub.s32 0, %v99
    %v101 = vrot.slane %v96, %v100
    %v103 = vmul.f32 %v94, %v101
    %v104 = vmul.f32 %v95, %v101
    %v105 = vld [vmem:[%s2] sm:$0x1]
    %v107 = vlaneseq
    %v108 = vshrl.u32 %v107, 7
    %v109 = vsub.s32 0, %v108
    %v110 = vrot.slane %v105, %v109
    %v112 = vadd.f32 %v103, %v110
    %v113 = vadd.f32 %v104, %v110
    %v114 = vpack.c.bf16 %v113, %v112
    %v115 = vld [vmem:[#allocation5] sm:$0xf]
    %v116 = vld [vmem:[#allocation5 + $0x4] sm:$0xf]
    %v117 = vld [vmem:[#allocation5 + $0x8] sm:$0xf]
    %v118 = vld [vmem:[#allocation5 + $0xc] sm:$0xf]
    %v119 = vld [vmem:[#allocation5 + $0x10] sm:$0xf]
    %v120 = vld [vmem:[#allocation5 + $0x14] sm:$0xf]
    %v121 = vld [vmem:[#allocation5 + $0x18] sm:$0xf]
    %v122 = vld [vmem:[#allocation5 + $0x1c] sm:$0xf]
    %v123 = vld [vmem:[#allocation5 + $0x20] sm:$0xf]
    %v124 = vld [vmem:[#allocation5 + $0x24] sm:$0xf]
    %v125 = vld [vmem:[#allocation5 + $0x28] sm:$0xf]
    %v126 = vld [vmem:[#allocation5 + $0x2c] sm:$0xf]
    %v127 = vld [vmem:[#allocation5 + $0x30] sm:$0xf]
    %v128 = vld [vmem:[#allocation5 + $0x34] sm:$0xf]
    %v129 = vld [vmem:[#allocation5 + $0x38] sm:$0xf]
    %v130 = vld [vmem:[#allocation5 + $0x3c] sm:$0xf]
    %v131 = vld [vmem:[%s4] sm:$0x1]
    %v133 = vlaneseq
    %v134 = vshrl.u32 %v133, 7
    %v135 = vsub.s32 0, %v134
    %v136 = vrot.slane %v131, %v135
    %v154 = vunpack.c.l.b16 %v115
    %v155 = vunpack.c.l.b16 %v116
    %v156 = vunpack.c.l.b16 %v117
    %v157 = vunpack.c.l.b16 %v118
    %v158 = vunpack.c.l.b16 %v119
    %v159 = vunpack.c.l.b16 %v120
    %v160 = vunpack.c.l.b16 %v121
    %v161 = vunpack.c.l.b16 %v122
    %v162 = vunpack.c.l.b16 %v123
    %v163 = vunpack.c.l.b16 %v124
    %v164 = vunpack.c.l.b16 %v125
    %v165 = vunpack.c.l.b16 %v126
    %v166 = vunpack.c.l.b16 %v127
    %v167 = vunpack.c.l.b16 %v128
    %v168 = vunpack.c.l.b16 %v129
    %v169 = vunpack.c.l.b16 %v130
    %v170 = vpack.c.b16 %v155, %v154
    %v171 = vpack.c.b16 %v157, %v156
    %v172 = vpack.c.b16 %v159, %v158
    %v173 = vpack.c.b16 %v161, %v160
    %v174 = vpack.c.b16 %v163, %v162
    %v175 = vpack.c.b16 %v165, %v164
    %v176 = vpack.c.b16 %v167, %v166
    %v177 = vpack.c.b16 %v169, %v168
    %186 = vmatprep.subr.bf16.mxu0 0
    %187 = vmatpush1.bf16.msra.mxu0 %v177
    %188 = vmatprep.subr.bf16.mxu0 0
    %189 = vmatpush1.bf16.msra.mxu0 %v176
    %190 = vmatprep.subr.bf16.mxu0 0
    %191 = vmatpush1.bf16.msra.mxu0 %v175
    %192 = vmatprep.subr.bf16.mxu0 0
    %193 = vmatpush1.bf16.msra.mxu0 %v174
    %194 = vmatprep.subr.bf16.mxu0 0
    %195 = vmatpush1.bf16.msra.mxu0 %v173
    %196 = vmatprep.subr.bf16.mxu0 0
    %197 = vmatpush1.bf16.msra.mxu0 %v172
    %198 = vmatprep.subr.bf16.mxu0 0
    %199 = vmatpush1.bf16.msra.mxu0 %v171
    %200 = vmatprep.subr.bf16.mxu0 0
    %201 = vmatpush1.bf16.msra.mxu0 %v170
    %202 = vmatprep.subr.bf16.mxu0 0
    %203 = vmatpush2.bf16.msra.mxu0 0
    %204 = vmatprep.subr.bf16.mxu0 0
    %205 = vmatpush2.bf16.msra.mxu0 0
    %206 = vmatprep.subr.bf16.mxu0 0
    %207 = vmatpush2.bf16.msra.mxu0 0
    %208 = vmatprep.subr.bf16.mxu0 0
    %209 = vmatpush2.bf16.msra.mxu0 0
    %210 = vmatprep.subr.bf16.mxu0 0
    %211 = vmatpush2.bf16.msra.mxu0 0
    %212 = vmatprep.subr.bf16.mxu0 0
    %213 = vmatpush2.bf16.msra.mxu0 0
    %214 = vmatprep.subr.bf16.mxu0 0
    %215 = vmatpush2.bf16.msra.mxu0 0
    %216 = vmatprep.subr.bf16.mxu0 0
    %217 = vmatpush2.bf16.msra.mxu0 0
    %218 = vmatprep.mubr.bf16.mxu0 0
    %219 = vmatmul.mubr.bf16.gmra.mxu0 %v114
    %v220 = vpop.f32.mrf.mxu0
    %v221 = vadd.f32 %v136, %v220
    %v222 = vpop.f32.mrf.mxu0
    %v223 = vpop.f32.mrf.mxu0
    %v224 = vadd.f32 %v136, %v223
    %v225 = vpop.f32.mrf.mxu0
    %226 = vdwg.mxu0
    %v227 = vadd.f32 %v50, %v221
    %v228 = vadd.f32 %v51, %v224
    %229 = vst [vmem:[#allocation7] sm:$0xff] %v227
    %230 = vst [vmem:[#allocation7 + $0x8] sm:$0xff] %v228
    // Predicated region
    $region30: #{tpu_custom_call.1} parent=1 // pred_check
      _
    $region31: #{tpu_custom_call.1} parent=1 // pred_check_branch
      %232 = sbr.rel (0) target = $region33
    $region32: #{tpu_custom_call.1} parent=1 // pred_region
      %s234 = ssub.s32 256, 256
      %235 = vsyncadd [#allocation4], %s234
      %s236 = sshll.u32 [#allocation7], 4
      %s237 = int_to_ptr.vmem [resolvable:$true] %s236
      %242 = dma.vmem_to_hbm [thread:$0]  %s237, 256, %s5, [#allocation4], 128, 128, 8
    $region33: #{tpu_custom_call.1} parent=1 // pred_fallthru
      _
    // Predicated region
    $region34: #{tpu_custom_call.1} parent=1 // pred_check
      _
    $region35: #{tpu_custom_call.1} parent=1 // pred_check_branch
      %244 = sbr.rel (0) target = $region37
    $region36: #{tpu_custom_call.1} parent=1 // pred_region
      %245 = dma.done [#allocation4], 256
    $region37: #{tpu_custom_call.1} parent=1 // pred_fallthru
      _
    %246 = vsyncpa [#allocation3], 1
    %247 = vsyncpa [#allocation6], 1
    %248 = vsyncpa [#allocation4], 1

</llo_original>
